<compile_context>
chip_gen: v7x
topology: tpu7x:2x2x1
jax: 0.10.0
libtpu: 0.0.40
codegen_flags: <defaults>
</compile_context>

<pallas_src>
import functools

import numpy as np

import jax
import jax.numpy as jnp
from jax.experimental import pallas as pl
from jax.experimental.pallas import tpu as pltpu


def _avg_pool_kernel(x_ref, win_id_ref, o_ref, *, stride):
    # x_ref:      (rows_blk, H*W)    input rows (one row per (n, c) pair)
    # win_id_ref: (H*W, 1) int32     flat output-cell id covering each input
    #                                pixel, -1 for pixels cropped by the pool
    # o_ref:      (rows_blk, OH*OW)  pooled output rows
    hw = x_ref.shape[-1]
    p = o_ref.shape[-1]
    # Rebuild the sparse pooling matrix in VMEM: M[q, j] = 1/s^2 iff input
    # pixel q falls in output cell j.  Pure compare + select (VPU), no HBM.
    col = jax.lax.broadcasted_iota(jnp.int32, (hw, p), 1)
    m = jnp.where(win_id_ref[...] == col, 1.0 / (stride * stride), 0.0)
    m = m.astype(x_ref.dtype)
    o_ref[...] = jnp.dot(
        x_ref[...], m, preferred_element_type=jnp.float32
    ).astype(o_ref.dtype)


def _window_ids(h, w, stride):
    """(H*W, 1) int32: output-cell index of each input pixel (-1 if cropped)."""
    oh, ow = h // stride, w // stride
    qh = np.repeat(np.arange(h), w)           # flattened (h, w) -> row index
    qw = np.tile(np.arange(w), h)
    valid = (qh < oh * stride) & (qw < ow * stride)   # AvgPool2d floors/crops
    wid = np.where(valid, (qh // stride) * ow + (qw // stride), -1)
    return wid.astype(np.int32).reshape(h * w, 1), oh, ow


def _row_blocking(rows):
    """(block_rows, num_blocks) for the folded (N*C, H*W) matrix.

    Tiny problems: single grid step (the ~0.35us per-step overhead dominates on
    single-TC v5e/v6e and there is nothing for "parallel" to shard).  With
    >=16 rows, split into 2 parallel 8-sublane-aligned blocks so both v7x
    TensorCores get work.
    """
    if rows >= 16 and rows % 16 == 0:
        return rows // 2, 2
    return rows, 1


@functools.partial(jax.jit, static_argnames=("stride", "expand_ratio"))
def downsample_forward(x, *, stride, expand_ratio):
    """Downsample.forward: AvgPool2d(stride) then concat (expand_ratio-1) zero copies.

    x: (N, C, H, W) float32 (NCHW) -> (N, C*expand_ratio, H//stride, W//stride)
    """
    n, c, h, w = x.shape
    wid_np, oh, ow = _window_ids(h, w, stride)
    hw, p = h * w, oh * ow
    rows = n * c
    rb, g = _row_blocking(rows)

    x2d = x.reshape(rows, hw)          # free: merge of leading dims, row-major
    wid = jnp.asarray(wid_np)          # tiny constant (~hw*4 bytes)

    itemsize = jnp.dtype(x.dtype).itemsize
    cost = pl.CostEstimate(
        flops=2 * rows * p * stride * stride,        # real window MACs only
        transcendentals=0,
        bytes_accessed=(rows * hw + rows * p) * itemsize + hw * 4,
    )

    pooled = pl.pallas_call(
        functools.partial(_avg_pool_kernel, stride=stride),
        out_shape=jax.ShapeDtypeStruct((rows, p), x.dtype),
        grid=(g,),
        in_specs=[
            pl.BlockSpec((rb, hw), lambda i: (i, 0)),
            pl.BlockSpec((hw, 1), lambda i: (0, 0)),   # constant block, DMA'd once
        ],
        out_specs=pl.BlockSpec((rb, p), lambda i: (i, 0)),
        compiler_params=pltpu.CompilerParams(
            dimension_semantics=("parallel",)),
        cost_estimate=cost,
    )(x2d, wid)

    pooled = pooled.reshape(n, c, oh, ow)              # free: split of lead dim
    if expand_ratio > 1:
        # Zero channel groups come from the wrapper (broadcast-zero, fused by
        # XLA) so the kernel never routes all-zero rows through VPU/vst.
        # Note: torch's x.mul(0) would propagate NaN/Inf into these channels;
        # we emit true zeros (only differs for non-finite inputs).
        zeros = jnp.zeros((n, (expand_ratio - 1) * c, oh, ow), pooled.dtype)
        pooled = jnp.concatenate([pooled, zeros], axis=1)
    return pooled


if __name__ == "__main__":
    key = jax.random.PRNGKey(0)

    # Shapes consistent with the module: in_planes=4, planes=8, stride=2.
    N, C, H, W = 2, 4, 16, 16
    stride = 2
    planes = 8
    assert planes % C == 0
    expand_ratio = planes // C

    x = jax.random.normal(key, (N, C, H, W), dtype=jnp.float32)

    y = downsample_forward(x, stride=stride, expand_ratio=expand_ratio)
    y = jax.block_until_ready(y)

    # Pure-JAX reference (same semantics as nn.AvgPool2d(stride) + torch.cat).
    x_pool = x.reshape(N, C, H // stride, stride, W // stride, stride).mean(axis=(3, 5))
    y_ref = jnp.concatenate(
        [x_pool] + [jnp.zeros_like(x_pool)] * (expand_ratio - 1), axis=1)

    assert y.shape == (N, C * expand_ratio, H // stride, W // stride)
    assert jnp.allclose(y, y_ref, atol=1e-5, rtol=1e-5)

    print("KERNEL_OK")
</pallas_src>

<mosaic_0001>
module attributes {stable_mosaic.version = 11 : i64} {
  func.func @_avg_pool_kernel(%arg0: i32, %arg1: memref<8x256xf32, #tpu.memory_space<vmem>>, %arg2: memref<256x1xi32, #tpu.memory_space<vmem>>, %arg3: memref<8x64xf32, #tpu.memory_space<vmem>>) attributes {dimension_semantics = [#tpu.dimension_semantics<parallel>], iteration_bounds = array<i64: 1>, scalar_prefetch = 0 : i64, scratch_operands = 0 : i64, tpu.core_type = #tpu.core_type<tc>, window_params = [{transform_indices = @transform_0, window_bounds = array<i64: 8, 256>}, {pipeline_mode = #tpu.pipeline_mode<synchronous>, transform_indices = @transform_1, window_bounds = array<i64: 256, 1>}, {transform_indices = @transform_2, window_bounds = array<i64: 8, 64>}]} {
    %0 = tpu.iota {dimensions = array<i32: 1>} : vector<256x64xi32>
    %c0 = arith.constant 0 : index
    %c0_0 = arith.constant 0 : index
    %1 = vector.load %arg2[%c0, %c0_0] : memref<256x1xi32, #tpu.memory_space<vmem>>, vector<256x1xi32>
    %2 = vector.broadcast %1 : vector<256x1xi32> to vector<256x64xi32>
    %3 = arith.cmpi eq, %2, %0 : vector<256x64xi32>
    %cst = arith.constant 2.500000e-01 : f32
    %cst_1 = arith.constant 0.000000e+00 : f32
    %4 = vector.broadcast %cst : f32 to vector<256x64xf32>
    %5 = vector.broadcast %cst_1 : f32 to vector<256x64xf32>
    %6 = arith.select %3, %4, %5 : vector<256x64xi1>, vector<256x64xf32>
    %c0_2 = arith.constant 0 : index
    %c0_3 = arith.constant 0 : index
    %7 = vector.load %arg1[%c0_2, %c0_3] : memref<8x256xf32, #tpu.memory_space<vmem>>, vector<8x256xf32>
    %cst_4 = arith.constant dense<0.000000e+00> : vector<8x64xf32>
    %8 = tpu.matmul %7, %6, %cst_4 {dimension_numbers = #tpu.dot_dimension_numbers<[1], [0], [0], [1], [0, 0, 1, 1], [], []>} : vector<8x256xf32>, vector<256x64xf32>, vector<8x64xf32> -> vector<8x64xf32>
    %c0_5 = arith.constant 0 : index
    %c0_6 = arith.constant 0 : index
    %9 = vector.load %arg3[%c0_5, %c0_6] : memref<8x64xf32, #tpu.memory_space<vmem>>, vector<8x64xf32>
    tpu.vector_store %arg3[%c0_5, %c0_6], %8 {strides = array<i32>} : memref<8x64xf32, #tpu.memory_space<vmem>>, vector<8x64xf32>,
    return
  }
  func.func @transform_0(%arg0: i32) -> (i32, i32) {
    %c0_i32 = arith.constant 0 : i32
    %c0_i32_0 = arith.constant 0 : i32
    return %arg0, %c0_i32 : i32, i32
  }
  func.func @transform_1(%arg0: i32) -> (i32, i32) {
    %c0_i32 = arith.constant 0 : i32
    %c0_i32_0 = arith.constant 0 : i32
    %c0_i32_1 = arith.constant 0 : i32
    return %c0_i32, %c0_i32_0 : i32, i32
  }
  func.func @transform_2(%arg0: i32) -> (i32, i32) {
    %c0_i32 = arith.constant 0 : i32
    %c0_i32_0 = arith.constant 0 : i32
    return %arg0, %c0_i32 : i32, i32
  }
}

</mosaic_0001>

<llo_original>
// kernel: downsample_forward.1
$region0: #{downsample_forward.1}
  #allocation0 [shape = 'u32[]', space=smem, size = 0x4, offset = 0x4, fixed_abs, tag = 'smem constant byte address 0x4 - core index']
  #allocation1 [shape = 'u32[144,128]{1,0:T(1,128)}', space=vmem, size = 0x12000, scoped, tag = 'internal scratch']
  %s0 = inlined_call_operand.vmem [shape: f32[8,256], index: 0, kind: input, shape index: {}]
  %s1 = inlined_call_operand.hbm [shape: s32[256,1], index: 1, kind: input, shape index: {}]
  %s2 = inlined_call_operand.vmem [shape: f32[8,64], index: 2, kind: output, shape index: {}]
  %s3 = sld [smem:[#allocation0]]
  $region22: #{downsample_forward.1} parent=0
    _
  %s5 = ssub.s32 1, %s3
  %s6 = scalar_select 0, %s5, %s3
  $region1: #{downsample_forward.1} parent=0
    #allocation2 [shape = 'u8[131072]{0}', space=vmem, size = 0x20000, scoped, tag = 'input window, operand 1, single buffered']
    #allocation3 [shape = 's32[1]{0}', space=sflag, size = 0x4, scoped, tag = 'scoped memory for downsample_forward.1']
    %7 = vsyncpa [#allocation3], 0
    // Predicated region
    $region2: #{downsample_forward.1} parent=1 // pred_check
      _
    $region3: #{downsample_forward.1} parent=1 // pred_check_branch
      %9 = sbr.rel (0) target = $region5
    $region4: #{downsample_forward.1} parent=1 // pred_region
      _
    $region5: #{downsample_forward.1} parent=1 // pred_fallthru
      _
    // Predicated region
    $region6: #{downsample_forward.1} parent=1 // pred_check
      _
    $region7: #{downsample_forward.1} parent=1 // pred_check_branch
      %11 = sbr.rel (0) target = $region9
    $region8: #{downsample_forward.1} parent=1 // pred_region
      %s13 = ssub.s32 4096, 4096
      %14 = vsyncadd [#allocation3], %s13
      %s15 = sshll.u32 [#allocation2], 4
      %s16 = int_to_ptr.vmem [resolvable:$true] %s15
      %21 = dma.hbm_to_vmem [thread:$0]  %s1, 4096, %s16, [#allocation3], 128, 128, 8
    $region9: #{downsample_forward.1} parent=1 // pred_fallthru
      _
    // Predicated region
    $region10: #{downsample_forward.1} parent=1 // pred_check
      _
    $region11: #{downsample_forward.1} parent=1 // pred_check_branch
      %23 = sbr.rel (0) target = $region13
    $region12: #{downsample_forward.1} parent=1 // pred_region
      %24 = dma.done [#allocation3], 4096
    $region13: #{downsample_forward.1} parent=1 // pred_fallthru
      _
    %v25 = vlaneseq
    %v26 = vand.u32 %v25, 127
    %v27 = vld [vmem:[#allocation2] sm:$0xff]
    %v28 = vld [vmem:[#allocation2 + $0x8] sm:$0xff]
    %v29 = vld [vmem:[#allocation2 + $0x10] sm:$0xff]
    %v30 = vld [vmem:[#allocation2 + $0x18] sm:$0xff]
    %v31 = vld [vmem:[#allocation2 + $0x20] sm:$0xff]
    %v32 = vld [vmem:[#allocation2 + $0x28] sm:$0xff]
    %v33 = vld [vmem:[#allocation2 + $0x30] sm:$0xff]
    %v34 = vld [vmem:[#allocation2 + $0x38] sm:$0xff]
    %v35 = vld [vmem:[#allocation2 + $0x40] sm:$0xff]
    %v36 = vld [vmem:[#allocation2 + $0x48] sm:$0xff]
    %v37 = vld [vmem:[#allocation2 + $0x50] sm:$0xff]
    %v38 = vld [vmem:[#allocation2 + $0x58] sm:$0xff]
    %v39 = vld [vmem:[#allocation2 + $0x60] sm:$0xff]
    %v40 = vld [vmem:[#allocation2 + $0x68] sm:$0xff]
    %v41 = vld [vmem:[#allocation2 + $0x70] sm:$0xff]
    %v42 = vld [vmem:[#allocation2 + $0x78] sm:$0xff]
    %v43 = vld [vmem:[#allocation2 + $0x80] sm:$0xff]
    %v44 = vld [vmem:[#allocation2 + $0x88] sm:$0xff]
    %v45 = vld [vmem:[#allocation2 + $0x90] sm:$0xff]
    %v46 = vld [vmem:[#allocation2 + $0x98] sm:$0xff]
    %v47 = vld [vmem:[#allocation2 + $0xa0] sm:$0xff]
    %v48 = vld [vmem:[#allocation2 + $0xa8] sm:$0xff]
    %v49 = vld [vmem:[#allocation2 + $0xb0] sm:$0xff]
    %v50 = vld [vmem:[#allocation2 + $0xb8] sm:$0xff]
    %v51 = vld [vmem:[#allocation2 + $0xc0] sm:$0xff]
    %v52 = vld [vmem:[#allocation2 + $0xc8] sm:$0xff]
    %v53 = vld [vmem:[#allocation2 + $0xd0] sm:$0xff]
    %v54 = vld [vmem:[#allocation2 + $0xd8] sm:$0xff]
    %v55 = vld [vmem:[#allocation2 + $0xe0] sm:$0xff]
    %v56 = vld [vmem:[#allocation2 + $0xe8] sm:$0xff]
    %v57 = vld [vmem:[#allocation2 + $0xf0] sm:$0xff]
    %v58 = vld [vmem:[#allocation2 + $0xf8] sm:$0xff]
    %59 = vset.pattern.permute.xlu0 0
    %60 = vperm.xlu0 %59, %v27
    %v61 = vpop.permute.xlu0 %60
    %62 = vset.pattern.permute.xlu0 0
    %63 = vperm.xlu0 %62, %v28
    %v64 = vpop.permute.xlu0 %63
    %65 = vset.pattern.permute.xlu0 0
    %66 = vperm.xlu0 %65, %v29
    %v67 = vpop.permute.xlu0 %66
    %68 = vset.pattern.permute.xlu0 0
    %69 = vperm.xlu0 %68, %v30
    %v70 = vpop.permute.xlu0 %69
    %71 = vset.pattern.permute.xlu0 0
    %72 = vperm.xlu0 %71, %v31
    %v73 = vpop.permute.xlu0 %72
    %74 = vset.pattern.permute.xlu0 0
    %75 = vperm.xlu0 %74, %v32
    %v76 = vpop.permute.xlu0 %75
    %77 = vset.pattern.permute.xlu0 0
    %78 = vperm.xlu0 %77, %v33
    %v79 = vpop.permute.xlu0 %78
    %80 = vset.pattern.permute.xlu0 0
    %81 = vperm.xlu0 %80, %v34
    %v82 = vpop.permute.xlu0 %81
    %83 = vset.pattern.permute.xlu0 0
    %84 = vperm.xlu0 %83, %v35
    %v85 = vpop.permute.xlu0 %84
    %86 = vset.pattern.permute.xlu0 0
    %87 = vperm.xlu0 %86, %v36
    %v88 = vpop.permute.xlu0 %87
    %89 = vset.pattern.permute.xlu0 0
    %90 = vperm.xlu0 %89, %v37
    %v91 = vpop.permute.xlu0 %90
    %92 = vset.pattern.permute.xlu0 0
    %93 = vperm.xlu0 %92, %v38
    %v94 = vpop.permute.xlu0 %93
    %95 = vset.pattern.permute.xlu0 0
    %96 = vperm.xlu0 %95, %v39
    %v97 = vpop.permute.xlu0 %96
    %98 = vset.pattern.permute.xlu0 0
    %99 = vperm.xlu0 %98, %v40
    %v100 = vpop.permute.xlu0 %99
    %101 = vset.pattern.permute.xlu0 0
    %102 = vperm.xlu0 %101, %v41
    %v103 = vpop.permute.xlu0 %102
    %104 = vset.pattern.permute.xlu0 0
    %105 = vperm.xlu0 %104, %v42
    %v106 = vpop.permute.xlu0 %105
    %107 = vset.pattern.permute.xlu0 0
    %108 = vperm.xlu0 %107, %v43
    %v109 = vpop.permute.xlu0 %108
    %110 = vset.pattern.permute.xlu0 0
    %111 = vperm.xlu0 %110, %v44
    %v112 = vpop.permute.xlu0 %111
    %113 = vset.pattern.permute.xlu0 0
    %114 = vperm.xlu0 %113, %v45
    %v115 = vpop.permute.xlu0 %114
    %116 = vset.pattern.permute.xlu0 0
    %117 = vperm.xlu0 %116, %v46
    %v118 = vpop.permute.xlu0 %117
    %119 = vset.pattern.permute.xlu0 0
    %120 = vperm.xlu0 %119, %v47
    %v121 = vpop.permute.xlu0 %120
    %122 = vset.pattern.permute.xlu0 0
    %123 = vperm.xlu0 %122, %v48
    %v124 = vpop.permute.xlu0 %123
    %125 = vset.pattern.permute.xlu0 0
    %126 = vperm.xlu0 %125, %v49
    %v127 = vpop.permute.xlu0 %126
    %128 = vset.pattern.permute.xlu0 0
    %129 = vperm.xlu0 %128, %v50
    %v130 = vpop.permute.xlu0 %129
    %131 = vset.pattern.permute.xlu0 0
    %132 = vperm.xlu0 %131, %v51
    %v133 = vpop.permute.xlu0 %132
    %134 = vset.pattern.permute.xlu0 0
    %135 = vperm.xlu0 %134, %v52
    %v136 = vpop.permute.xlu0 %135
    %137 = vset.pattern.permute.xlu0 0
    %138 = vperm.xlu0 %137, %v53
    %v139 = vpop.permute.xlu0 %138
    %140 = vset.pattern.permute.xlu0 0
    %141 = vperm.xlu0 %140, %v54
    %v142 = vpop.permute.xlu0 %141
    %143 = vset.pattern.permute.xlu0 0
    %144 = vperm.xlu0 %143, %v55
    %v145 = vpop.permute.xlu0 %144
    %146 = vset.pattern.permute.xlu0 0
    %147 = vperm.xlu0 %146, %v56
    %v148 = vpop.permute.xlu0 %147
    %149 = vset.pattern.permute.xlu0 0
    %150 = vperm.xlu0 %149, %v57
    %v151 = vpop.permute.xlu0 %150
    %152 = vset.pattern.permute.xlu0 0
    %153 = vperm.xlu0 %152, %v58
    %v154 = vpop.permute.xlu0 %153
    %vm155 = vcmp.eq.s32.totalorder %v61, %v26
    %vm156 = vcmp.eq.s32.totalorder %v64, %v26
    %vm157 = vcmp.eq.s32.totalorder %v67, %v26
    %vm158 = vcmp.eq.s32.totalorder %v70, %v26
    %vm159 = vcmp.eq.s32.totalorder %v73, %v26
    %vm160 = vcmp.eq.s32.totalorder %v76, %v26
    %vm161 = vcmp.eq.s32.totalorder %v79, %v26
    %vm162 = vcmp.eq.s32.totalorder %v82, %v26
    %vm163 = vcmp.eq.s32.totalorder %v85, %v26
    %vm164 = vcmp.eq.s32.totalorder %v88, %v26
    %vm165 = vcmp.eq.s32.totalorder %v91, %v26
    %vm166 = vcmp.eq.s32.totalorder %v94, %v26
    %vm167 = vcmp.eq.s32.totalorder %v97, %v26
    %vm168 = vcmp.eq.s32.totalorder %v100, %v26
    %vm169 = vcmp.eq.s32.totalorder %v103, %v26
    %vm170 = vcmp.eq.s32.totalorder %v106, %v26
    %vm171 = vcmp.eq.s32.totalorder %v109, %v26
    %vm172 = vcmp.eq.s32.totalorder %v112, %v26
    %vm173 = vcmp.eq.s32.totalorder %v115, %v26
    %vm174 = vcmp.eq.s32.totalorder %v118, %v26
    %vm175 = vcmp.eq.s32.totalorder %v121, %v26
    %vm176 = vcmp.eq.s32.totalorder %v124, %v26
    %vm177 = vcmp.eq.s32.totalorder %v127, %v26
    %vm178 = vcmp.eq.s32.totalorder %v130, %v26
    %vm179 = vcmp.eq.s32.totalorder %v133, %v26
    %vm180 = vcmp.eq.s32.totalorder %v136, %v26
    %vm181 = vcmp.eq.s32.totalorder %v139, %v26
    %vm182 = vcmp.eq.s32.totalorder %v142, %v26
    %vm183 = vcmp.eq.s32.totalorder %v145, %v26
    %vm184 = vcmp.eq.s32.totalorder %v148, %v26
    %vm185 = vcmp.eq.s32.totalorder %v151, %v26
    %vm186 = vcmp.eq.s32.totalorder %v154, %v26
    %v187 = vsel %vm155, 0.25, 0.0
    %v188 = vsel %vm156, 0.25, 0.0
    %v189 = vsel %vm157, 0.25, 0.0
    %v190 = vsel %vm158, 0.25, 0.0
    %v191 = vsel %vm159, 0.25, 0.0
    %v192 = vsel %vm160, 0.25, 0.0
    %v193 = vsel %vm161, 0.25, 0.0
    %v194 = vsel %vm162, 0.25, 0.0
    %v195 = vsel %vm163, 0.25, 0.0
    %v196 = vsel %vm164, 0.25, 0.0
    %v197 = vsel %vm165, 0.25, 0.0
    %v198 = vsel %vm166, 0.25, 0.0
    %v199 = vsel %vm167, 0.25, 0.0
    %v200 = vsel %vm168, 0.25, 0.0
    %v201 = vsel %vm169, 0.25, 0.0
    %v202 = vsel %vm170, 0.25, 0.0
    %v203 = vsel %vm171, 0.25, 0.0
    %v204 = vsel %vm172, 0.25, 0.0
    %v205 = vsel %vm173, 0.25, 0.0
    %v206 = vsel %vm174, 0.25, 0.0
    %v207 = vsel %vm175, 0.25, 0.0
    %v208 = vsel %vm176, 0.25, 0.0
    %v209 = vsel %vm177, 0.25, 0.0
    %v210 = vsel %vm178, 0.25, 0.0
    %v211 = vsel %vm179, 0.25, 0.0
    %v212 = vsel %vm180, 0.25, 0.0
    %v213 = vsel %vm181, 0.25, 0.0
    %v214 = vsel %vm182, 0.25, 0.0
    %v215 = vsel %vm183, 0.25, 0.0
    %v216 = vsel %vm184, 0.25, 0.0
    %v217 = vsel %vm185, 0.25, 0.0
    %v218 = vsel %vm186, 0.25, 0.0
    %v219 = vld [vmem:[%s0] sm:$0xff]
    %v220 = vld [vmem:[%s0 + $0x8] sm:$0xff]
    %221 = vmatprep.subr.mxu0 0.0
    %222 = vmatpush1.msra.mxu0 %v187
    %223 = vmatprep.subr.mxu0 0.0
    %224 = vmatpush1.msra.mxu0 %v188
    %225 = vmatprep.subr.mxu0 0.0
    %226 = vmatpush1.msra.mxu0 %v189
    %227 = vmatprep.subr.mxu0 0.0
    %228 = vmatpush1.msra.mxu0 %v190
    %229 = vmatprep.subr.mxu0 0.0
    %230 = vmatpush1.msra.mxu0 %v191
    %231 = vmatprep.subr.mxu0 0.0
    %232 = vmatpush1.msra.mxu0 %v192
    %233 = vmatprep.subr.mxu0 0.0
    %234 = vmatpush1.msra.mxu0 %v193
    %235 = vmatprep.subr.mxu0 0.0
    %236 = vmatpush1.msra.mxu0 %v194
    %237 = vmatprep.subr.mxu0 0.0
    %238 = vmatpush1.msra.mxu0 %v195
    %239 = vmatprep.subr.mxu0 0.0
    %240 = vmatpush1.msra.mxu0 %v196
    %241 = vmatprep.subr.mxu0 0.0
    %242 = vmatpush1.msra.mxu0 %v197
    %243 = vmatprep.subr.mxu0 0.0
    %244 = vmatpush1.msra.mxu0 %v198
    %245 = vmatprep.subr.mxu0 0.0
    %246 = vmatpush1.msra.mxu0 %v199
    %247 = vmatprep.subr.mxu0 0.0
    %248 = vmatpush1.msra.mxu0 %v200
    %249 = vmatprep.subr.mxu0 0.0
    %250 = vmatpush1.msra.mxu0 %v201
    %251 = vmatprep.subr.mxu0 0.0
    %252 = vmatpush1.msra.mxu0 %v202
    %253 = vmatprep.subr.mxu0 0.0
    %254 = vmatpush1.msra.mxu0 %v203
    %255 = vmatprep.subr.mxu0 0.0
    %256 = vmatpush1.msra.mxu0 %v204
    %257 = vmatprep.subr.mxu0 0.0
    %258 = vmatpush1.msra.mxu0 %v205
    %259 = vmatprep.subr.mxu0 0.0
    %260 = vmatpush1.msra.mxu0 %v206
    %261 = vmatprep.subr.mxu0 0.0
    %262 = vmatpush1.msra.mxu0 %v207
    %263 = vmatprep.subr.mxu0 0.0
    %264 = vmatpush1.msra.mxu0 %v208
    %265 = vmatprep.subr.mxu0 0.0
    %266 = vmatpush1.msra.mxu0 %v209
    %267 = vmatprep.subr.mxu0 0.0
    %268 = vmatpush1.msra.mxu0 %v210
    %269 = vmatprep.subr.mxu0 0.0
    %270 = vmatpush1.msra.mxu0 %v211
    %271 = vmatprep.subr.mxu0 0.0
    %272 = vmatpush1.msra.mxu0 %v212
    %273 = vmatprep.subr.mxu0 0.0
    %274 = vmatpush1.msra.mxu0 %v213
    %275 = vmatprep.subr.mxu0 0.0
    %276 = vmatpush1.msra.mxu0 %v214
    %277 = vmatprep.subr.mxu0 0.0
    %278 = vmatpush1.msra.mxu0 %v215
    %279 = vmatprep.subr.mxu0 0.0
    %280 = vmatpush1.msra.mxu0 %v216
    %281 = vmatprep.subr.mxu0 0.0
    %282 = vmatpush1.msra.mxu0 %v217
    %283 = vmatprep.subr.mxu0 0.0
    %284 = vmatpush1.msra.mxu0 %v218
    %285 = vmatprep.mubr.f32.mxu0 %v220
    %286 = vmatmul.mubr.f32.gmra.mrb[0].mxu0 %v219
    %v287 = vpop.f32.mrb[0].mxu0
    %v288 = vadd.f32 0.0, %v287
    %v289 = vpop.f32.mrb[0].mxu0
    %290 = vdwg.mxu0
    %vm291 = vcmask 523264
    %292 = vst.msk [vmem:[%s2] sm:$0xff] %vm291, %v288
    // Predicated region
    $region14: #{downsample_forward.1} parent=1 // pred_check
      _
    $region15: #{downsample_forward.1} parent=1 // pred_check_branch
      %294 = sbr.rel (0) target = $region17
    $region16: #{downsample_forward.1} parent=1 // pred_region
      _
    $region17: #{downsample_forward.1} parent=1 // pred_fallthru
      _
    // Predicated region
    $region18: #{downsample_forward.1} parent=1 // pred_check
      _
    $region19: #{downsample_forward.1} parent=1 // pred_check_branch
      %296 = sbr.rel (0) target = $region21
    $region20: #{downsample_forward.1} parent=1 // pred_region
      _
    $region21: #{downsample_forward.1} parent=1 // pred_fallthru
      _
    %297 = vsyncpa [#allocation3], 1

</llo_original>
